<compile_context>
chip_gen: v7x
topology: tpu7x:2x2x1
jax: 0.10.0
libtpu: 0.0.40
codegen_flags: <defaults>
</compile_context>

<pallas_src>
import jax
import jax.numpy as jnp
from jax.experimental import pallas as pl
from jax.experimental.pallas import tpu as pltpu

H = W = 16
HW = H * W                 # 256  -> lane axis of the output slab
CIN = 3
COUT = 8
KH = KW = 3
K = KH * KW * CIN          # 27   -> per-image patch rows
KB = K + 1                 # 28   -> + ones row (bias folded into weights)
K_TOT = 2 * KB             # 56   -> both images stacked (block-diag weights)
COUT_TOT = 2 * COUT        # 16   -> output rows for both images


def fused_conv_kernel(p_ref, w_ref, o_ref):
    """Whole forward in one MXU pass.

    p_ref : (56, 256)  [patches(x1); ones; patches(x2); ones], cols = (h, w)
    w_ref : (16, 56)   block-diagonal [w1+bias | 0 ; 0 | w2+bias]
    o_ref : (16, 256)  lane-dense output slab; reshape -> (2, COUT, H, W)
    """
    o_ref[...] = jnp.dot(w_ref[...], p_ref[...],
                         preferred_element_type=jnp.float32)


def prepare_params(params):
    """One-time prep: fold each conv pair, fold biases, build block-diag W."""
    def img_block(w_sum, b_sum):
        # OIHW flatten -> columns ordered (cin, kh, kw); this matches the
        # channel ordering of lax.conv_general_dilated_patches.
        wm = w_sum.reshape(COUT, K).astype(jnp.float32)
        bb = b_sum.reshape(COUT, 1).astype(jnp.float32)
        return jnp.concatenate([wm, bb], axis=1)              # (8, 28)

    wb1 = img_block(params["w1_1"] + params["w1_2"],
                    params["b1_1"] + params["b1_2"])
    wb2 = img_block(params["w2_1"] + params["w2_2"],
                    params["b2_1"] + params["b2_2"])
    z = jnp.zeros((COUT, KB), jnp.float32)
    w_big = jnp.concatenate(
        [jnp.concatenate([wb1, z], axis=1),
         jnp.concatenate([z, wb2], axis=1)], axis=0)          # (16, 56)
    return {"w": w_big}


def model_forward(prepared, x1, x2):
    # Single fused im2col for both images (one XLA patches op, batch=2).
    x = jnp.concatenate([x1, x2], axis=0).astype(jnp.float32)      # (2, 3, 16, 16)
    p = jax.lax.conv_general_dilated_patches(
        x, filter_shape=(KH, KW), window_strides=(1, 1),
        padding=((1, 1), (1, 1)),
        dimension_numbers=("NCHW", "OIHW", "NCHW"))                 # (2, 27, 16, 16)
    p = p.reshape(2, K, HW)
    ones = jnp.ones((2, 1, HW), jnp.float32)                        # bias rows
    p_big = jnp.concatenate([p, ones], axis=1).reshape(K_TOT, HW)   # (56, 256)

    out = pl.pallas_call(
        fused_conv_kernel,
        out_shape=jax.ShapeDtypeStruct((COUT_TOT, HW), jnp.float32),
        in_specs=[
            pl.BlockSpec(memory_space=pltpu.MemorySpace.VMEM),      # patches
            pl.BlockSpec(memory_space=pltpu.MemorySpace.VMEM),      # weights
        ],
        out_specs=pl.BlockSpec(memory_space=pltpu.MemorySpace.VMEM),
        cost_estimate=pl.CostEstimate(
            flops=2 * COUT_TOT * K_TOT * HW,
            bytes_accessed=4 * (K_TOT * HW + COUT_TOT * K_TOT + COUT_TOT * HW),
            transcendentals=0),
    )(p_big, prepared["w"])

    out = out.reshape(2, COUT, H, W)            # lane-dense slab is already NCHW
    return out[0:1], out[1:2]                   # (v3, v6), each (1, COUT, H, W)


def init_params(key):
    # Deterministic synthetic init (Conv2d(3, 8, 3) shapes); kaiming-ish scale.
    ks = jax.random.split(key, 8)
    fan_in = CIN * KH * KW
    bound = 1.0 / jnp.sqrt(fan_in)

    def w(k):
        return jax.random.uniform(k, (COUT, CIN, KH, KW), jnp.float32,
                                  minval=-bound, maxval=bound)

    def b(k):
        return jax.random.uniform(k, (COUT,), jnp.float32,
                                  minval=-bound, maxval=bound)

    return {
        "w1_1": w(ks[0]), "b1_1": b(ks[1]),
        "w1_2": w(ks[2]), "b1_2": b(ks[3]),
        "w2_1": w(ks[4]), "b2_1": b(ks[5]),
        "w2_2": w(ks[6]), "b2_2": b(ks[7]),
    }


def _ref_conv(x, w, b):
    out = jax.lax.conv_general_dilated(
        x, w, window_strides=(1, 1), padding=((1, 1), (1, 1)),
        dimension_numbers=("NCHW", "OIHW", "NCHW"))
    return out + b.reshape(1, COUT, 1, 1)


if __name__ == "__main__":
    key = jax.random.PRNGKey(0)
    kx1, kx2, kp = jax.random.split(key, 3)
    x1 = jax.random.normal(kx1, (1, CIN, H, W), jnp.float32)
    x2 = jax.random.normal(kx2, (1, CIN, H, W), jnp.float32)
    params = init_params(kp)

    # One-time (outside the hot path) parameter folding / layout.
    prepared = prepare_params(params)
    jax.block_until_ready(prepared)

    v3, v6 = jax.jit(model_forward)(prepared, x1, x2)
    jax.block_until_ready((v3, v6))
    assert v3.shape == (1, COUT, H, W) and v6.shape == (1, COUT, H, W)

    # Cross-check against XLA's conv (pre-summed weights differ only at ULP level).
    v3_ref = _ref_conv(x1, params["w1_1"], params["b1_1"]) + \
             _ref_conv(x1, params["w1_2"], params["b1_2"])
    v6_ref = _ref_conv(x2, params["w2_1"], params["b2_1"]) + \
             _ref_conv(x2, params["w2_2"], params["b2_2"])
    assert jnp.allclose(v3, v3_ref, rtol=1e-4, atol=1e-4)
    assert jnp.allclose(v6, v6_ref, rtol=1e-4, atol=1e-4)

    print("KERNEL_OK")
</pallas_src>

<mosaic_0001>
module attributes {stable_mosaic.version = 11 : i64} {
  func.func @fused_conv_kernel(%arg0: memref<56x256xf32, #tpu.memory_space<vmem>>, %arg1: memref<16x56xf32, #tpu.memory_space<vmem>>, %arg2: memref<16x256xf32, #tpu.memory_space<vmem>>) attributes {dimension_semantics = [], scalar_prefetch = 0 : i64, scratch_operands = 0 : i64, tpu.core_type = #tpu.core_type<tc>} {
    %c0 = arith.constant 0 : index
    %c0_0 = arith.constant 0 : index
    %0 = vector.load %arg1[%c0, %c0_0] : memref<16x56xf32, #tpu.memory_space<vmem>>, vector<16x56xf32>
    %c0_1 = arith.constant 0 : index
    %c0_2 = arith.constant 0 : index
    %1 = vector.load %arg0[%c0_1, %c0_2] : memref<56x256xf32, #tpu.memory_space<vmem>>, vector<56x256xf32>
    %cst = arith.constant dense<0.000000e+00> : vector<16x256xf32>
    %2 = tpu.matmul %0, %1, %cst {dimension_numbers = #tpu.dot_dimension_numbers<[1], [0], [0], [1], [0, 0, 1, 1], [], []>} : vector<16x56xf32>, vector<56x256xf32>, vector<16x256xf32> -> vector<16x256xf32>
    %c0_3 = arith.constant 0 : index
    %c0_4 = arith.constant 0 : index
    %3 = vector.load %arg2[%c0_3, %c0_4] : memref<16x256xf32, #tpu.memory_space<vmem>>, vector<16x256xf32>
    tpu.vector_store %arg2[%c0_3, %c0_4], %2 {strides = array<i32>} : memref<16x256xf32, #tpu.memory_space<vmem>>, vector<16x256xf32>,
    return
  }
}

</mosaic_0001>

<llo_original>
// kernel: model_forward.1
$region0: #{model_forward.1}
  #allocation0 [shape = 'u32[]', space=smem, size = 0x4, offset = 0x4, fixed_abs, tag = 'smem constant byte address 0x4 - core index']
  #allocation1 [shape = 'u32[144,128]{1,0:T(1,128)}', space=vmem, size = 0x12000, scoped, tag = 'internal scratch']
  %s0 = inlined_call_operand.vmem [shape: f32[56,256], index: 0, kind: input, shape index: {}]
  %s1 = inlined_call_operand.vmem [shape: f32[16,56], index: 1, kind: input, shape index: {}]
  %s2 = inlined_call_operand.vmem [shape: f32[16,256], index: 2, kind: output, shape index: {}]
  %s3 = sld [smem:[#allocation0]]
  $region18: #{model_forward.1} parent=0
    _
  %s5 = ssub.s32 1, %s3
  %s6 = scalar_select 0, %s5, %s3
  // Predicated region
  $region2: #{model_forward.1} parent=0 // pred_check
    _
  $region3: #{model_forward.1} parent=0 // pred_check_branch
    %8 = sbr.rel (0) target = $region5
  $region4: #{model_forward.1} parent=0 // pred_region
    _
  $region5: #{model_forward.1} parent=0 // pred_fallthru
    _
  // Predicated region
  $region6: #{model_forward.1} parent=0 // pred_check
    _
  $region7: #{model_forward.1} parent=0 // pred_check_branch
    %10 = sbr.rel (0) target = $region9
  $region8: #{model_forward.1} parent=0 // pred_region
    _
  $region9: #{model_forward.1} parent=0 // pred_fallthru
    _
  %v11 = vld [vmem:[%s1] sm:$0xff]
  %v12 = vld [vmem:[%s1 + $0x8] sm:$0xff]
  %v13 = vld [vmem:[%s0] sm:$0xff]
  %v14 = vld [vmem:[%s0 + $0x8] sm:$0xff]
  %v15 = vld [vmem:[%s0 + $0x10] sm:$0xff]
  %v16 = vld [vmem:[%s0 + $0x18] sm:$0xff]
  %v17 = vld [vmem:[%s0 + $0x20] sm:$0xff]
  %v18 = vld [vmem:[%s0 + $0x28] sm:$0xff]
  %v19 = vld [vmem:[%s0 + $0x30] sm:$0xff]
  %v20 = vld [vmem:[%s0 + $0x38] sm:$0xff]
  %v21 = vld [vmem:[%s0 + $0x40] sm:$0xff]
  %v22 = vld [vmem:[%s0 + $0x48] sm:$0xff]
  %v23 = vld [vmem:[%s0 + $0x50] sm:$0xff]
  %v24 = vld [vmem:[%s0 + $0x58] sm:$0xff]
  %v25 = vld [vmem:[%s0 + $0x60] sm:$0xff]
  %v26 = vld [vmem:[%s0 + $0x68] sm:$0xff]
  %vm27 = vcmask 457728
  %v29 = vsel %vm27, %v11, 0
  %v32 = vsel %vm27, %v12, 0
  %34 = vmatprep.subr.mxu0 %v14
  %35 = vmatpush1.msra.mxu0 %v13
  %36 = vmatprep.subr.mxu0 %v16
  %37 = vmatpush1.msra.mxu0 %v15
  %38 = vmatprep.subr.mxu0 %v18
  %39 = vmatpush1.msra.mxu0 %v17
  %40 = vmatprep.subr.mxu0 %v20
  %41 = vmatpush1.msra.mxu0 %v19
  %42 = vmatprep.subr.mxu0 %v22
  %43 = vmatpush1.msra.mxu0 %v21
  %44 = vmatprep.subr.mxu0 %v24
  %45 = vmatpush1.msra.mxu0 %v23
  %46 = vmatprep.subr.mxu0 %v26
  %47 = vmatpush1.msra.mxu0 %v25
  %48 = vmatprep.subr.mxu0 0.0
  %49 = vmatpush1.msra.mxu0 0.0
  %50 = vmatprep.subr.mxu0 0.0
  %51 = vmatpush1.msra.mxu0 0.0
  %52 = vmatprep.subr.mxu0 0.0
  %53 = vmatpush1.msra.mxu0 0.0
  %54 = vmatprep.subr.mxu0 0.0
  %55 = vmatpush1.msra.mxu0 0.0
  %56 = vmatprep.subr.mxu0 0.0
  %57 = vmatpush1.msra.mxu0 0.0
  %58 = vmatprep.subr.mxu0 0.0
  %59 = vmatpush1.msra.mxu0 0.0
  %60 = vmatprep.subr.mxu0 0.0
  %61 = vmatpush1.msra.mxu0 0.0
  %62 = vmatprep.subr.mxu0 0.0
  %63 = vmatpush1.msra.mxu0 0.0
  %64 = vmatprep.subr.mxu0 0.0
  %65 = vmatpush1.msra.mxu0 0.0
  %66 = vmatprep.subr.mxu0 0.0
  %67 = vmatpush1.msra.mxu0 0.0
  %68 = vmatprep.subr.mxu0 0.0
  %69 = vmatpush1.msra.mxu0 0.0
  %70 = vmatprep.subr.mxu0 0.0
  %71 = vmatpush1.msra.mxu0 0.0
  %72 = vmatprep.subr.mxu0 0.0
  %73 = vmatpush1.msra.mxu0 0.0
  %74 = vmatprep.subr.mxu0 0.0
  %75 = vmatpush1.msra.mxu0 0.0
  %76 = vmatprep.subr.mxu0 0.0
  %77 = vmatpush1.msra.mxu0 0.0
  %78 = vmatprep.subr.mxu0 0.0
  %79 = vmatpush1.msra.mxu0 0.0
  %80 = vmatprep.subr.mxu0 0.0
  %81 = vmatpush1.msra.mxu0 0.0
  %82 = vmatprep.subr.mxu0 0.0
  %83 = vmatpush1.msra.mxu0 0.0
  %84 = vmatprep.subr.mxu0 0.0
  %85 = vmatpush1.msra.mxu0 0.0
  %86 = vmatprep.subr.mxu0 0.0
  %87 = vmatpush1.msra.mxu0 0.0
  %88 = vmatprep.subr.mxu0 0.0
  %89 = vmatpush1.msra.mxu0 0.0
  %90 = vmatprep.subr.mxu0 0.0
  %91 = vmatpush1.msra.mxu0 0.0
  %92 = vmatprep.subr.mxu0 0.0
  %93 = vmatpush1.msra.mxu0 0.0
  %94 = vmatprep.subr.mxu0 0.0
  %95 = vmatpush1.msra.mxu0 0.0
  %96 = vmatprep.subr.mxu0 0.0
  %97 = vmatpush1.msra.mxu0 0.0
  %98 = vmatprep.mubr.f32.mxu0 0.0
  %99 = vmatmul.mubr.f32.gmra.mrb[0].mxu0 %v29
  %v100 = vpop.f32.mrb[0].mxu0
  %v101 = vadd.f32 0.0, %v100
  %v102 = vpop.f32.mrb[0].mxu0
  %v103 = vadd.f32 0.0, %v102
  %104 = vmatprep.mubr.f32.mxu0 0.0
  %105 = vmatmul.mubr.f32.gmra.mrb[0].mxu0 %v32
  %v106 = vpop.f32.mrb[0].mxu0
  %v107 = vadd.f32 0.0, %v106
  %v108 = vpop.f32.mrb[0].mxu0
  %v109 = vadd.f32 0.0, %v108
  %110 = vdwg.mxu0
  %111 = vst [vmem:[%s2] sm:$0xff] %v101
  %112 = vst [vmem:[%s2 + $0x8] sm:$0xff] %v103
  %113 = vst [vmem:[%s2 + $0x10] sm:$0xff] %v107
  %114 = vst [vmem:[%s2 + $0x18] sm:$0xff] %v109
  // Predicated region
  $region10: #{model_forward.1} parent=0 // pred_check
    _
  $region11: #{model_forward.1} parent=0 // pred_check_branch
    %116 = sbr.rel (0) target = $region13
  $region12: #{model_forward.1} parent=0 // pred_region
    _
  $region13: #{model_forward.1} parent=0 // pred_fallthru
    _
  // Predicated region
  $region14: #{model_forward.1} parent=0 // pred_check
    _
  $region15: #{model_forward.1} parent=0 // pred_check_branch
    %118 = sbr.rel (0) target = $region17
  $region16: #{model_forward.1} parent=0 // pred_region
    _
  $region17: #{model_forward.1} parent=0 // pred_fallthru
    _

</llo_original>
